<compile_context>
chip_gen: v7x
topology: tpu7x:2x2x1
jax: 0.10.0
libtpu: 0.0.40
codegen_flags: <defaults>
</compile_context>

<pallas_src>
import jax
import jax.numpy as jnp
from jax.experimental import pallas as pl
from jax.experimental.pallas import tpu as pltpu


def _attn_kernel(keys_ref, values_ref, qproj_ref, c_ref):
    # keys_ref   : (TB, S, Hd)    native dtype
    # values_ref : (TB, S, He)    native dtype
    # qproj_ref  : (TB, 1, Hd)    native dtype (query already projected by attMat)
    # c_ref      : (TB, 1, He)
    k = keys_ref[...]
    v = values_ref[...]
    q = qproj_ref[...]

    # e[b, 1, s] = sum_h q[b, 1, h] * keys[b, s, h]
    # Batched MXU contraction ('bqd,bkd->bqk' pattern), f32 accumulation.
    e = jax.lax.dot_general(
        q, k, (((2,), (2,)), ((0,), (0,))),
        preferred_element_type=jnp.float32)                                # (TB, 1, S)

    # Numerically-stable softmax over src_len (dim=1 in the PyTorch code);
    # S is the lane axis here so the reduces are cheap XLU lane reduces.
    m = jnp.max(e, axis=-1, keepdims=True)                                 # (TB, 1, 1)
    p = jnp.exp(e - m)
    denom = jnp.sum(p, axis=-1, keepdims=True)
    alpha = p / denom                                                      # exact, f32

    # c[b, 1, h] = sum_s alpha[b, 1, s] * values[b, s, h]
    # Batched MXU matmul ('bqk,bkd->bqd' pattern), native-dtype multiply, f32 acc.
    c = jax.lax.dot_general(
        alpha.astype(v.dtype), v, (((2,), (1,)), ((0,), (0,))),
        preferred_element_type=jnp.float32)                                # (TB, 1, He)
    c_ref[...] = c.astype(c_ref.dtype)


_TILE_TARGET_BYTES = 6 * 1024 * 1024   # ~6 MiB of padded keys+values per grid step
_MAX_BATCH_BLOCK = 256                 # bounds batched-matmul unroll + f32 intermediates


def _round_up(x, m):
    return ((x + m - 1) // m) * m


def _pick_batch_block(B, S, Hd, He, itemsize, block_b=None):
    if block_b is not None:
        TB = max(1, min(block_b, B))
    else:
        # Padded VMEM footprint per batch row: last dim pads to 128 lanes,
        # second-to-last dim pads to 8 sublanes.
        row_bytes = _round_up(S, 8) * (_round_up(Hd, 128) + _round_up(He, 128)) * itemsize
        TB = max(1, _TILE_TARGET_BYTES // max(row_bytes, 1))
        TB = min(TB, _MAX_BATCH_BLOCK)
        if B >= 16:
            # v7x megacore: guarantee >= 2 grid steps so both TensorCores get work.
            TB = min(TB, max(8, ((B // 2) // 8) * 8))
        TB = min(TB, B)
    if TB < B:
        # When sub-blocking the batch (sublane) axis, keep TB a multiple of 8.
        TB = min(max(8, (TB // 8) * 8), B)
    return TB


def my_attention_forward(values, keys, query, W=None, att_type="mult", block_b=None):
    """values: (B,S,He), keys: (B,S,Hd), query: (B,Hq), W: (Hd,Hq) = attMat.weight.
    Returns c_t with shape (B, He)."""
    B, S, He = values.shape
    _, _, Hd = keys.shape
    Hq = query.shape[-1]

    if att_type == "dot":
        # attDot: e = bmm(keys, query.unsqueeze(-1)) -> requires Hd == Hq
        assert Hd == Hq, "'dot' attention requires keys hidden size == query hidden size"
        q_proj = query.astype(keys.dtype)
    elif att_type == "mult":
        assert W is not None and W.shape == (Hd, Hq), "attMat weight must have shape (Hd, Hq)"
        # Hoisted projection: one dense, MXU-efficient matmul outside the kernel.
        q_proj = jnp.dot(query, W.T, preferred_element_type=jnp.float32).astype(keys.dtype)
    else:
        raise ValueError(f"attType {att_type!r} not supported here ('dot' or 'mult')")

    # (B, 1, Hd): gives the kernel a ready-made lhs for the batched score matmul.
    q_proj = q_proj.reshape(B, 1, Hd)

    itemsize = jnp.dtype(values.dtype).itemsize
    TB = _pick_batch_block(B, S, Hd, He, itemsize, block_b)
    n_blocks = pl.cdiv(B, TB)
    Bp = n_blocks * TB
    if Bp != B:
        pad = Bp - B
        keys = jnp.pad(keys, ((0, pad), (0, 0), (0, 0)))
        values = jnp.pad(values, ((0, pad), (0, 0), (0, 0)))
        q_proj = jnp.pad(q_proj, ((0, pad), (0, 0), (0, 0)))

    out = pl.pallas_call(
        _attn_kernel,
        out_shape=jax.ShapeDtypeStruct((Bp, 1, He), values.dtype),
        grid_spec=pltpu.PrefetchScalarGridSpec(
            num_scalar_prefetch=0,
            grid=(n_blocks,),
            in_specs=[
                pl.BlockSpec((TB, S, Hd), lambda b: (b, 0, 0)),   # keys
                pl.BlockSpec((TB, S, He), lambda b: (b, 0, 0)),   # values
                pl.BlockSpec((TB, 1, Hd), lambda b: (b, 0, 0)),   # projected query
            ],
            out_specs=pl.BlockSpec((TB, 1, He), lambda b: (b, 0, 0)),
        ),
        compiler_params=pltpu.CompilerParams(
            dimension_semantics=("parallel",),
            # Double-buffered <=6 MiB K/V tiles + small q/out tiles + f32 softmax
            # intermediates; comfortably inside v7x's 64 MiB physical VMEM.
            vmem_limit_bytes=40 * 1024 * 1024,
        ),
    )(keys, values, q_proj)
    return out[:B, 0, :]


def _reference_forward(values, keys, query, W=None):
    q_proj = query if W is None else query @ W.T
    e = jnp.einsum("bsh,bh->bs", keys, q_proj)
    alpha = jax.nn.softmax(e, axis=1)
    return jnp.einsum("bs,bsh->bh", alpha, values)


if __name__ == "__main__":
    # Small shapes consistent with the module: batch=2, src_len=8, hidden=32
    B, S, H = 2, 8, 32          # enc_hidden_size == dec_hidden_size == 32
    key = jax.random.PRNGKey(0)
    k_v, k_k, k_q, k_w = jax.random.split(key, 4)

    values = jax.random.normal(k_v, (B, S, H), dtype=jnp.float32)
    keys_ = jax.random.normal(k_k, (B, S, H), dtype=jnp.float32)
    query = jax.random.normal(k_q, (B, H), dtype=jnp.float32)
    # attMat = nn.Linear(enc_hidden_size, dec_hidden_size, bias=False):
    # weight shape (dec_hidden_size, enc_hidden_size), torch-like uniform init.
    bound = 1.0 / jnp.sqrt(jnp.float32(H))
    W = jax.random.uniform(k_w, (H, H), dtype=jnp.float32, minval=-bound, maxval=bound)

    # 'mult' attention
    c_t = jax.block_until_ready(my_attention_forward(values, keys_, query, W, att_type="mult"))
    c_ref = _reference_forward(values, keys_, query, W)
    assert c_t.shape == (B, H)
    assert jnp.allclose(c_t, c_ref, atol=2e-3, rtol=2e-3), "mult mismatch vs reference"

    # 'dot' attention (requires Hd == Hq, matching torch's bmm shape requirement)
    c_dot = jax.block_until_ready(my_attention_forward(values, keys_, query, att_type="dot"))
    c_dot_ref = _reference_forward(values, keys_, query, None)
    assert jnp.allclose(c_dot, c_dot_ref, atol=2e-3, rtol=2e-3), "dot mismatch vs reference"

    # exercise the explicit batch-sub-blocking + padding path (TB < B, B % TB != 0)
    B2 = 18
    kv2, kk2, kq2 = jax.random.split(jax.random.PRNGKey(1), 3)
    values2 = jax.random.normal(kv2, (B2, S, H), dtype=jnp.float32)
    keys2 = jax.random.normal(kk2, (B2, S, H), dtype=jnp.float32)
    query2 = jax.random.normal(kq2, (B2, H), dtype=jnp.float32)
    c2 = jax.block_until_ready(
        my_attention_forward(values2, keys2, query2, W, att_type="mult", block_b=8))
    c2_ref = _reference_forward(values2, keys2, query2, W)
    assert c2.shape == (B2, H)
    assert jnp.allclose(c2, c2_ref, atol=2e-3, rtol=2e-3), "blocked mismatch vs reference"

    # exercise the auto block picker's multi-step (>=2 grid steps for B>=16) path
    B3 = 32
    kv3, kk3, kq3 = jax.random.split(jax.random.PRNGKey(2), 3)
    values3 = jax.random.normal(kv3, (B3, S, H), dtype=jnp.float32)
    keys3 = jax.random.normal(kk3, (B3, S, H), dtype=jnp.float32)
    query3 = jax.random.normal(kq3, (B3, H), dtype=jnp.float32)
    c3 = jax.block_until_ready(
        my_attention_forward(values3, keys3, query3, W, att_type="mult"))
    c3_ref = _reference_forward(values3, keys3, query3, W)
    assert c3.shape == (B3, H)
    assert jnp.allclose(c3, c3_ref, atol=2e-3, rtol=2e-3), "auto-blocked mismatch vs reference"

    print("KERNEL_OK")
</pallas_src>

<mosaic_0001>
module attributes {stable_mosaic.version = 11 : i64} {
  func.func @_attn_kernel(%arg0: i32, %arg1: memref<2x8x32xf32, #tpu.memory_space<vmem>>, %arg2: memref<2x8x32xf32, #tpu.memory_space<vmem>>, %arg3: memref<2x1x32xf32, #tpu.memory_space<vmem>>, %arg4: memref<2x1x32xf32, #tpu.memory_space<vmem>>) attributes {dimension_semantics = [#tpu.dimension_semantics<parallel>], iteration_bounds = array<i64: 1>, scalar_prefetch = 0 : i64, scratch_operands = 0 : i64, tpu.core_type = #tpu.core_type<tc>, window_params = [{transform_indices = @transform_0, window_bounds = array<i64: 2, 8, 32>}, {transform_indices = @transform_1, window_bounds = array<i64: 2, 8, 32>}, {transform_indices = @transform_2, window_bounds = array<i64: 2, 1, 32>}, {transform_indices = @transform_3, window_bounds = array<i64: 2, 1, 32>}]} {
    %c0 = arith.constant 0 : index
    %c0_0 = arith.constant 0 : index
    %c0_1 = arith.constant 0 : index
    %0 = vector.load %arg1[%c0, %c0_0, %c0_1] : memref<2x8x32xf32, #tpu.memory_space<vmem>>, vector<2x8x32xf32>
    %c0_2 = arith.constant 0 : index
    %c0_3 = arith.constant 0 : index
    %c0_4 = arith.constant 0 : index
    %1 = vector.load %arg2[%c0_2, %c0_3, %c0_4] : memref<2x8x32xf32, #tpu.memory_space<vmem>>, vector<2x8x32xf32>
    %c0_5 = arith.constant 0 : index
    %c0_6 = arith.constant 0 : index
    %c0_7 = arith.constant 0 : index
    %2 = vector.load %arg3[%c0_5, %c0_6, %c0_7] : memref<2x1x32xf32, #tpu.memory_space<vmem>>, vector<2x1x32xf32>
    %cst = arith.constant dense<0.000000e+00> : vector<2x1x8xf32>
    %3 = tpu.matmul %2, %0, %cst {dimension_numbers = #tpu.dot_dimension_numbers<[2], [2], [1], [1], [0, 0, 0, 1, 1, 1], [0], [0]>} : vector<2x1x32xf32>, vector<2x8x32xf32>, vector<2x1x8xf32> -> vector<2x1x8xf32>
    %cst_8 = arith.constant dense<0xFF800000> : vector<2x1xf32>
    %4 = vector.multi_reduction <maximumf>, %3, %cst_8 [2] : vector<2x1x8xf32> to vector<2x1xf32>
    %5 = vector.shape_cast %4 : vector<2x1xf32> to vector<2x1x1xf32>
    %6 = vector.broadcast %5 : vector<2x1x1xf32> to vector<2x1x8xf32>
    %7 = arith.subf %3, %6 : vector<2x1x8xf32>
    %8 = math.exp %7 : vector<2x1x8xf32>
    %cst_9 = arith.constant dense<0.000000e+00> : vector<2x1xf32>
    %9 = vector.multi_reduction <add>, %8, %cst_9 [2] : vector<2x1x8xf32> to vector<2x1xf32>
    %10 = vector.shape_cast %9 : vector<2x1xf32> to vector<2x1x1xf32>
    %11 = vector.broadcast %10 : vector<2x1x1xf32> to vector<2x1x8xf32>
    %12 = arith.divf %8, %11 : vector<2x1x8xf32>
    %cst_10 = arith.constant dense<0.000000e+00> : vector<2x1x32xf32>
    %13 = tpu.matmul %12, %1, %cst_10 {dimension_numbers = #tpu.dot_dimension_numbers<[2], [1], [1], [2], [0, 0, 0, 1, 1, 2], [0], [0]>} : vector<2x1x8xf32>, vector<2x8x32xf32>, vector<2x1x32xf32> -> vector<2x1x32xf32>
    %c0_11 = arith.constant 0 : index
    %c0_12 = arith.constant 0 : index
    %c0_13 = arith.constant 0 : index
    %14 = vector.load %arg4[%c0_11, %c0_12, %c0_13] : memref<2x1x32xf32, #tpu.memory_space<vmem>>, vector<2x1x32xf32>
    tpu.vector_store %arg4[%c0_11, %c0_12, %c0_13], %13 {strides = array<i32>} : memref<2x1x32xf32, #tpu.memory_space<vmem>>, vector<2x1x32xf32>,
    return
  }
  func.func @transform_0(%arg0: i32) -> (i32, i32, i32) {
    %c0_i32 = arith.constant 0 : i32
    %c0_i32_0 = arith.constant 0 : i32
    %c0_i32_1 = arith.constant 0 : i32
    return %arg0, %c0_i32, %c0_i32_0 : i32, i32, i32
  }
  func.func @transform_1(%arg0: i32) -> (i32, i32, i32) {
    %c0_i32 = arith.constant 0 : i32
    %c0_i32_0 = arith.constant 0 : i32
    %c0_i32_1 = arith.constant 0 : i32
    return %arg0, %c0_i32, %c0_i32_0 : i32, i32, i32
  }
  func.func @transform_2(%arg0: i32) -> (i32, i32, i32) {
    %c0_i32 = arith.constant 0 : i32
    %c0_i32_0 = arith.constant 0 : i32
    %c0_i32_1 = arith.constant 0 : i32
    return %arg0, %c0_i32, %c0_i32_0 : i32, i32, i32
  }
  func.func @transform_3(%arg0: i32) -> (i32, i32, i32) {
    %c0_i32 = arith.constant 0 : i32
    %c0_i32_0 = arith.constant 0 : i32
    %c0_i32_1 = arith.constant 0 : i32
    return %arg0, %c0_i32, %c0_i32_0 : i32, i32, i32
  }
}

</mosaic_0001>

<llo_original>
// kernel: tpu_custom_call.1
$region0: #{tpu_custom_call.1}
  #allocation0 [shape = 'u32[]', space=smem, size = 0x4, offset = 0x4, fixed_abs, tag = 'smem constant byte address 0x4 - core index']
  #allocation1 [shape = 'u32[144,128]{1,0:T(1,128)}', space=vmem, size = 0x12000, scoped, tag = 'internal scratch']
  %s0 = inlined_call_operand.hbm [shape: f32[2,8,32], index: 0, kind: input, shape index: {}]
  %s1 = inlined_call_operand.hbm [shape: f32[2,8,32], index: 1, kind: input, shape index: {}]
  %s2 = inlined_call_operand.vmem [shape: f32[2,1,32], index: 2, kind: input, shape index: {}]
  %s3 = inlined_call_operand.hbm [shape: f32[2,1,32], index: 3, kind: output, shape index: {}]
  %s4 = sld [smem:[#allocation0]]
  $region30: #{tpu_custom_call.1} parent=0
    _
  %s6 = ssub.s32 1, %s4
  %s7 = scalar_select 0, %s6, %s4
  $region1: #{tpu_custom_call.1} parent=0
    #allocation2 [shape = 'u8[8192]{0}', space=vmem, size = 0x2000, scoped, tag = 'input window, operand 0, single buffered']
    #allocation3 [shape = 's32[1]{0}', space=sflag, size = 0x4, scoped, tag = 'scoped memory for tpu_custom_call.1']
    #allocation4 [shape = 's32[1]{0}', space=sflag, size = 0x4, scoped, tag = 'scoped memory for tpu_custom_call.1']
    #allocation5 [shape = 'u8[8192]{0}', space=vmem, size = 0x2000, scoped, tag = 'input window, operand 1, single buffered']
    #allocation6 [shape = 's32[1]{0}', space=sflag, size = 0x4, scoped, tag = 'scoped memory for tpu_custom_call.1']
    #allocation7 [shape = 'u8[1024]{0}', space=vmem, size = 0x400, scoped, tag = 'output window, operand 0, single buffered']
    %8 = vsyncpa [#allocation3], 0
    %9 = vsyncpa [#allocation6], 0
    %10 = vsyncpa [#allocation4], 0
    // Predicated region
    $region2: #{tpu_custom_call.1} parent=1 // pred_check
      _
    $region3: #{tpu_custom_call.1} parent=1 // pred_check_branch
      %12 = sbr.rel (0) target = $region5
    $region4: #{tpu_custom_call.1} parent=1 // pred_region
      %s14 = ssub.s32 256, 256
      %15 = vsyncadd [#allocation3], %s14
      %s16 = sshll.u32 [#allocation2], 4
      %s17 = int_to_ptr.vmem [resolvable:$true] %s16
      %22 = dma.hbm_to_vmem [thread:$0]  %s0, 256, %s17, [#allocation3], 128, 128, 8
    $region5: #{tpu_custom_call.1} parent=1 // pred_fallthru
      _
    // Predicated region
    $region6: #{tpu_custom_call.1} parent=1 // pred_check
      _
    $region7: #{tpu_custom_call.1} parent=1 // pred_check_branch
      %24 = sbr.rel (0) target = $region9
    $region8: #{tpu_custom_call.1} parent=1 // pred_region
      %s26 = ssub.s32 256, 256
      %27 = vsyncadd [#allocation6], %s26
      %s28 = sshll.u32 [#allocation5], 4
      %s29 = int_to_ptr.vmem [resolvable:$true] %s28
      %34 = dma.hbm_to_vmem [thread:$0]  %s1, 256, %s29, [#allocation6], 128, 128, 8
    $region9: #{tpu_custom_call.1} parent=1 // pred_fallthru
      _
    // Predicated region
    $region10: #{tpu_custom_call.1} parent=1 // pred_check
      _
    $region11: #{tpu_custom_call.1} parent=1 // pred_check_branch
      %36 = sbr.rel (0) target = $region13
    $region12: #{tpu_custom_call.1} parent=1 // pred_region
      _
    $region13: #{tpu_custom_call.1} parent=1 // pred_fallthru
      _
    // Predicated region
    $region14: #{tpu_custom_call.1} parent=1 // pred_check
      _
    $region15: #{tpu_custom_call.1} parent=1 // pred_check_branch
      %38 = sbr.rel (0) target = $region17
    $region16: #{tpu_custom_call.1} parent=1 // pred_region
      %39 = dma.done [#allocation3], 256
    $region17: #{tpu_custom_call.1} parent=1 // pred_fallthru
      _
    // Predicated region
    $region18: #{tpu_custom_call.1} parent=1 // pred_check
      _
    $region19: #{tpu_custom_call.1} parent=1 // pred_check_branch
      %41 = sbr.rel (0) target = $region21
    $region20: #{tpu_custom_call.1} parent=1 // pred_region
      %42 = dma.done [#allocation6], 256
    $region21: #{tpu_custom_call.1} parent=1 // pred_fallthru
      _
    %v43 = vld [vmem:[#allocation2] sm:$0xff]
    %v44 = vld [vmem:[#allocation2 + $0x8] sm:$0xff]
    %v45 = vld [vmem:[#allocation5] sm:$0xff]
    %v46 = vld [vmem:[#allocation5 + $0x8] sm:$0xff]
    %v47 = vld [vmem:[%s2] sm:$0x1]
    %v48 = vld [vmem:[%s2 + $0x1] sm:$0x1]
    %vm49 = vcmask 261120
    %v51 = vsel %vm49, %v47, 0
    %v54 = vsel %vm49, %v43, 0
    %56 = vmatprep.subr.mxu0 0.0
    %57 = vmatpush1.xpose.msra.mxu0 %v54
    %58 = vmatprep.subr.mxu0 0.0
    %59 = vmatpush1.xpose.msra.mxu0 0.0
    %60 = vmatprep.subr.mxu0 0.0
    %61 = vmatpush1.xpose.msra.mxu0 0.0
    %62 = vmatprep.subr.mxu0 0.0
    %63 = vmatpush1.xpose.msra.mxu0 0.0
    %64 = vmatprep.subr.mxu0 0.0
    %65 = vmatpush1.xpose.msra.mxu0 0.0
    %66 = vmatprep.subr.mxu0 0.0
    %67 = vmatpush1.xpose.msra.mxu0 0.0
    %68 = vmatprep.subr.mxu0 0.0
    %69 = vmatpush1.xpose.msra.mxu0 0.0
    %70 = vmatprep.subr.mxu0 0.0
    %71 = vmatpush1.xpose.msra.mxu0 0.0
    %72 = vmatprep.subr.mxu0 0.0
    %73 = vmatpush1.xpose.msra.mxu0 0.0
    %74 = vmatprep.subr.mxu0 0.0
    %75 = vmatpush1.xpose.msra.mxu0 0.0
    %76 = vmatprep.subr.mxu0 0.0
    %77 = vmatpush1.xpose.msra.mxu0 0.0
    %78 = vmatprep.subr.mxu0 0.0
    %79 = vmatpush1.xpose.msra.mxu0 0.0
    %80 = vmatprep.subr.mxu0 0.0
    %81 = vmatpush1.xpose.msra.mxu0 0.0
    %82 = vmatprep.subr.mxu0 0.0
    %83 = vmatpush1.xpose.msra.mxu0 0.0
    %84 = vmatprep.subr.mxu0 0.0
    %85 = vmatpush1.xpose.msra.mxu0 0.0
    %86 = vmatprep.subr.mxu0 0.0
    %87 = vmatpush1.xpose.msra.mxu0 0.0
    %88 = vmatprep.subr.mxu0 0.0
    %89 = vmatpush1.xpose.msra.mxu0 0.0
    %90 = vmatprep.subr.mxu0 0.0
    %91 = vmatpush1.xpose.msra.mxu0 0.0
    %92 = vmatprep.subr.mxu0 0.0
    %93 = vmatpush1.xpose.msra.mxu0 0.0
    %94 = vmatprep.subr.mxu0 0.0
    %95 = vmatpush1.xpose.msra.mxu0 0.0
    %96 = vmatprep.subr.mxu0 0.0
    %97 = vmatpush1.xpose.msra.mxu0 0.0
    %98 = vmatprep.subr.mxu0 0.0
    %99 = vmatpush1.xpose.msra.mxu0 0.0
    %100 = vmatprep.subr.mxu0 0.0
    %101 = vmatpush1.xpose.msra.mxu0 0.0
    %102 = vmatprep.subr.mxu0 0.0
    %103 = vmatpush1.xpose.msra.mxu0 0.0
    %104 = vmatprep.subr.mxu0 0.0
    %105 = vmatpush1.xpose.msra.mxu0 0.0
    %106 = vmatprep.subr.mxu0 0.0
    %107 = vmatpush1.xpose.msra.mxu0 0.0
    %108 = vmatprep.subr.mxu0 0.0
    %109 = vmatpush1.xpose.msra.mxu0 0.0
    %110 = vmatprep.subr.mxu0 0.0
    %111 = vmatpush1.xpose.msra.mxu0 0.0
    %112 = vmatprep.subr.mxu0 0.0
    %113 = vmatpush1.xpose.msra.mxu0 0.0
    %114 = vmatprep.subr.mxu0 0.0
    %115 = vmatpush1.xpose.msra.mxu0 0.0
    %116 = vmatprep.subr.mxu0 0.0
    %117 = vmatpush1.xpose.msra.mxu0 0.0
    %118 = vmatprep.subr.mxu0 0.0
    %119 = vmatpush1.xpose.msra.mxu0 0.0
    %120 = vmatprep.mubr.f32.mxu0 0.0
    %121 = vmatmul.mubr.f32.gmra.mrb[0].mxu0 %v51
    %v122 = vpop.f32.mrb[0].mxu0
    %v123 = vadd.f32 0.0, %v122
    %v124 = vpop.f32.mrb[0].mxu0
    %125 = vdwg.mxu0
    %v127 = vsel %vm49, %v48, 0
    %v130 = vsel %vm49, %v44, 0
    %132 = vmatprep.subr.mxu0 0.0
    %133 = vmatpush1.xpose.msra.mxu0 %v130
    %134 = vmatprep.subr.mxu0 0.0
    %135 = vmatpush1.xpose.msra.mxu0 0.0
    %136 = vmatprep.subr.mxu0 0.0
    %137 = vmatpush1.xpose.msra.mxu0 0.0
    %138 = vmatprep.subr.mxu0 0.0
    %139 = vmatpush1.xpose.msra.mxu0 0.0
    %140 = vmatprep.subr.mxu0 0.0
    %141 = vmatpush1.xpose.msra.mxu0 0.0
    %142 = vmatprep.subr.mxu0 0.0
    %143 = vmatpush1.xpose.msra.mxu0 0.0
    %144 = vmatprep.subr.mxu0 0.0
    %145 = vmatpush1.xpose.msra.mxu0 0.0
    %146 = vmatprep.subr.mxu0 0.0
    %147 = vmatpush1.xpose.msra.mxu0 0.0
    %148 = vmatprep.subr.mxu0 0.0
    %149 = vmatpush1.xpose.msra.mxu0 0.0
    %150 = vmatprep.subr.mxu0 0.0
    %151 = vmatpush1.xpose.msra.mxu0 0.0
    %152 = vmatprep.subr.mxu0 0.0
    %153 = vmatpush1.xpose.msra.mxu0 0.0
    %154 = vmatprep.subr.mxu0 0.0
    %155 = vmatpush1.xpose.msra.mxu0 0.0
    %156 = vmatprep.subr.mxu0 0.0
    %157 = vmatpush1.xpose.msra.mxu0 0.0
    %158 = vmatprep.subr.mxu0 0.0
    %159 = vmatpush1.xpose.msra.mxu0 0.0
    %160 = vmatprep.subr.mxu0 0.0
    %161 = vmatpush1.xpose.msra.mxu0 0.0
    %162 = vmatprep.subr.mxu0 0.0
    %163 = vmatpush1.xpose.msra.mxu0 0.0
    %164 = vmatprep.subr.mxu0 0.0
    %165 = vmatpush1.xpose.msra.mxu0 0.0
    %166 = vmatprep.subr.mxu0 0.0
    %167 = vmatpush1.xpose.msra.mxu0 0.0
    %168 = vmatprep.subr.mxu0 0.0
    %169 = vmatpush1.xpose.msra.mxu0 0.0
    %170 = vmatprep.subr.mxu0 0.0
    %171 = vmatpush1.xpose.msra.mxu0 0.0
    %172 = vmatprep.subr.mxu0 0.0
    %173 = vmatpush1.xpose.msra.mxu0 0.0
    %174 = vmatprep.subr.mxu0 0.0
    %175 = vmatpush1.xpose.msra.mxu0 0.0
    %176 = vmatprep.subr.mxu0 0.0
    %177 = vmatpush1.xpose.msra.mxu0 0.0
    %178 = vmatprep.subr.mxu0 0.0
    %179 = vmatpush1.xpose.msra.mxu0 0.0
    %180 = vmatprep.subr.mxu0 0.0
    %181 = vmatpush1.xpose.msra.mxu0 0.0
    %182 = vmatprep.subr.mxu0 0.0
    %183 = vmatpush1.xpose.msra.mxu0 0.0
    %184 = vmatprep.subr.mxu0 0.0
    %185 = vmatpush1.xpose.msra.mxu0 0.0
    %186 = vmatprep.subr.mxu0 0.0
    %187 = vmatpush1.xpose.msra.mxu0 0.0
    %188 = vmatprep.subr.mxu0 0.0
    %189 = vmatpush1.xpose.msra.mxu0 0.0
    %190 = vmatprep.subr.mxu0 0.0
    %191 = vmatpush1.xpose.msra.mxu0 0.0
    %192 = vmatprep.subr.mxu0 0.0
    %193 = vmatpush1.xpose.msra.mxu0 0.0
    %194 = vmatprep.subr.mxu0 0.0
    %195 = vmatpush1.xpose.msra.mxu0 0.0
    %196 = vmatprep.mubr.f32.mxu0 0.0
    %197 = vmatmul.mubr.f32.gmra.mrb[0].mxu0 %v127
    %v198 = vpop.f32.mrb[0].mxu0
    %v199 = vadd.f32 0.0, %v198
    %v200 = vpop.f32.mrb[0].mxu0
    %201 = vdwg.mxu0
    %vm202 = vcmask 57344
    %v203 = vsel %vm202, %v123, -inf
    %204 = vmax.xlane.f32.xlu0 %v203
    %v205 = vpop.xlane.xlu0 %204
    %v206 = vsel %vm202, %v199, -inf
    %207 = vmax.xlane.f32.xlu0 %v206
    %v208 = vpop.xlane.xlu0 %207
    %v209 = vsub.f32 %v123, %v205
    %v210 = vsub.f32 %v199, %v208
    %v211 = vmul.f32 %v209, 1.442695
    %v212 = vpow.pop %v211
    %v213 = vmul.f32 %v210, 1.442695
    %v214 = vpow.pop %v213
    %v215 = vsel %vm202, %v212, 0.0
    %216 = vadd.xlane.f32.xlu0 %v215
    %v217 = vpop.xlane.xlu0 %216
    %v218 = vsel %vm202, %v214, 0.0
    %219 = vadd.xlane.f32.xlu0 %v218
    %v220 = vpop.xlane.xlu0 %219
    %v221 = vrcp.pop %v217
    %v222 = vmul.f32 %v212, %v221
    %v223 = vrcp.pop %v220
    %v224 = vmul.f32 %v214, %v223
    %vm225 = vcmask 64512
    %v227 = vsel %vm225, %v222, 0
    %229 = vmatprep.subr.mxu0 0.0
    %230 = vmatpush1.msra.mxu0 %v45
    %231 = vmatprep.subr.mxu0 0.0
    %232 = vmatpush1.msra.mxu0 0.0
    %233 = vmatprep.subr.mxu0 0.0
    %234 = vmatpush1.msra.mxu0 0.0
    %235 = vmatprep.subr.mxu0 0.0
    %236 = vmatpush1.msra.mxu0 0.0
    %237 = vmatprep.subr.mxu0 0.0
    %238 = vmatpush1.msra.mxu0 0.0
    %239 = vmatprep.subr.mxu0 0.0
    %240 = vmatpush1.msra.mxu0 0.0
    %241 = vmatprep.subr.mxu0 0.0
    %242 = vmatpush1.msra.mxu0 0.0
    %243 = vmatprep.subr.mxu0 0.0
    %244 = vmatpush1.msra.mxu0 0.0
    %245 = vmatprep.subr.mxu0 0.0
    %246 = vmatpush1.msra.mxu0 0.0
    %247 = vmatprep.subr.mxu0 0.0
    %248 = vmatpush1.msra.mxu0 0.0
    %249 = vmatprep.subr.mxu0 0.0
    %250 = vmatpush1.msra.mxu0 0.0
    %251 = vmatprep.subr.mxu0 0.0
    %252 = vmatpush1.msra.mxu0 0.0
    %253 = vmatprep.subr.mxu0 0.0
    %254 = vmatpush1.msra.mxu0 0.0
    %255 = vmatprep.subr.mxu0 0.0
    %256 = vmatpush1.msra.mxu0 0.0
    %257 = vmatprep.subr.mxu0 0.0
    %258 = vmatpush1.msra.mxu0 0.0
    %259 = vmatprep.subr.mxu0 0.0
    %260 = vmatpush1.msra.mxu0 0.0
    %261 = vmatprep.subr.mxu0 0.0
    %262 = vmatpush1.msra.mxu0 0.0
    %263 = vmatprep.subr.mxu0 0.0
    %264 = vmatpush1.msra.mxu0 0.0
    %265 = vmatprep.subr.mxu0 0.0
    %266 = vmatpush1.msra.mxu0 0.0
    %267 = vmatprep.subr.mxu0 0.0
    %268 = vmatpush1.msra.mxu0 0.0
    %269 = vmatprep.subr.mxu0 0.0
    %270 = vmatpush1.msra.mxu0 0.0
    %271 = vmatprep.subr.mxu0 0.0
    %272 = vmatpush1.msra.mxu0 0.0
    %273 = vmatprep.subr.mxu0 0.0
    %274 = vmatpush1.msra.mxu0 0.0
    %275 = vmatprep.subr.mxu0 0.0
    %276 = vmatpush1.msra.mxu0 0.0
    %277 = vmatprep.subr.mxu0 0.0
    %278 = vmatpush1.msra.mxu0 0.0
    %279 = vmatprep.subr.mxu0 0.0
    %280 = vmatpush1.msra.mxu0 0.0
    %281 = vmatprep.subr.mxu0 0.0
    %282 = vmatpush1.msra.mxu0 0.0
    %283 = vmatprep.subr.mxu0 0.0
    %284 = vmatpush1.msra.mxu0 0.0
    %285 = vmatprep.subr.mxu0 0.0
    %286 = vmatpush1.msra.mxu0 0.0
    %287 = vmatprep.subr.mxu0 0.0
    %288 = vmatpush1.msra.mxu0 0.0
    %289 = vmatprep.subr.mxu0 0.0
    %290 = vmatpush1.msra.mxu0 0.0
    %291 = vmatprep.subr.mxu0 0.0
    %292 = vmatpush1.msra.mxu0 0.0
    %293 = vmatprep.mubr.f32.mxu0 0.0
    %294 = vmatmul.mubr.f32.gmra.mrb[0].mxu0 %v227
    %v295 = vpop.f32.mrb[0].mxu0
    %v296 = vadd.f32 0.0, %v295
    %v297 = vpop.f32.mrb[0].mxu0
    %298 = vdwg.mxu0
    %v300 = vsel %vm225, %v224, 0
    %302 = vmatprep.subr.mxu0 0.0
    %303 = vmatpush1.msra.mxu0 %v46
    %304 = vmatprep.subr.mxu0 0.0
    %305 = vmatpush1.msra.mxu0 0.0
    %306 = vmatprep.subr.mxu0 0.0
    %307 = vmatpush1.msra.mxu0 0.0
    %308 = vmatprep.subr.mxu0 0.0
    %309 = vmatpush1.msra.mxu0 0.0
    %310 = vmatprep.subr.mxu0 0.0
    %311 = vmatpush1.msra.mxu0 0.0
    %312 = vmatprep.subr.mxu0 0.0
    %313 = vmatpush1.msra.mxu0 0.0
    %314 = vmatprep.subr.mxu0 0.0
    %315 = vmatpush1.msra.mxu0 0.0
    %316 = vmatprep.subr.mxu0 0.0
    %317 = vmatpush1.msra.mxu0 0.0
    %318 = vmatprep.subr.mxu0 0.0
    %319 = vmatpush1.msra.mxu0 0.0
    %320 = vmatprep.subr.mxu0 0.0
    %321 = vmatpush1.msra.mxu0 0.0
    %322 = vmatprep.subr.mxu0 0.0
    %323 = vmatpush1.msra.mxu0 0.0
    %324 = vmatprep.subr.mxu0 0.0
    %325 = vmatpush1.msra.mxu0 0.0
    %326 = vmatprep.subr.mxu0 0.0
    %327 = vmatpush1.msra.mxu0 0.0
    %328 = vmatprep.subr.mxu0 0.0
    %329 = vmatpush1.msra.mxu0 0.0
    %330 = vmatprep.subr.mxu0 0.0
    %331 = vmatpush1.msra.mxu0 0.0
    %332 = vmatprep.subr.mxu0 0.0
    %333 = vmatpush1.msra.mxu0 0.0
    %334 = vmatprep.subr.mxu0 0.0
    %335 = vmatpush1.msra.mxu0 0.0
    %336 = vmatprep.subr.mxu0 0.0
    %337 = vmatpush1.msra.mxu0 0.0
    %338 = vmatprep.subr.mxu0 0.0
    %339 = vmatpush1.msra.mxu0 0.0
    %340 = vmatprep.subr.mxu0 0.0
    %341 = vmatpush1.msra.mxu0 0.0
    %342 = vmatprep.subr.mxu0 0.0
    %343 = vmatpush1.msra.mxu0 0.0
    %344 = vmatprep.subr.mxu0 0.0
    %345 = vmatpush1.msra.mxu0 0.0
    %346 = vmatprep.subr.mxu0 0.0
    %347 = vmatpush1.msra.mxu0 0.0
    %348 = vmatprep.subr.mxu0 0.0
    %349 = vmatpush1.msra.mxu0 0.0
    %350 = vmatprep.subr.mxu0 0.0
    %351 = vmatpush1.msra.mxu0 0.0
    %352 = vmatprep.subr.mxu0 0.0
    %353 = vmatpush1.msra.mxu0 0.0
    %354 = vmatprep.subr.mxu0 0.0
    %355 = vmatpush1.msra.mxu0 0.0
    %356 = vmatprep.subr.mxu0 0.0
    %357 = vmatpush1.msra.mxu0 0.0
    %358 = vmatprep.subr.mxu0 0.0
    %359 = vmatpush1.msra.mxu0 0.0
    %360 = vmatprep.subr.mxu0 0.0
    %361 = vmatpush1.msra.mxu0 0.0
    %362 = vmatprep.subr.mxu0 0.0
    %363 = vmatpush1.msra.mxu0 0.0
    %364 = vmatprep.subr.mxu0 0.0
    %365 = vmatpush1.msra.mxu0 0.0
    %366 = vmatprep.mubr.f32.mxu0 0.0
    %367 = vmatmul.mubr.f32.gmra.mrb[0].mxu0 %v300
    %v368 = vpop.f32.mrb[0].mxu0
    %v369 = vadd.f32 0.0, %v368
    %v370 = vpop.f32.mrb[0].mxu0
    %371 = vdwg.mxu0
    %vm372 = vcmask 253952
    %373 = vst.msk [vmem:[#allocation7] sm:$0x1] %vm372, %v296
    %374 = vst.msk [vmem:[#allocation7 + $0x1] sm:$0x1] %vm372, %v369
    // Predicated region
    $region22: #{tpu_custom_call.1} parent=1 // pred_check
      _
    $region23: #{tpu_custom_call.1} parent=1 // pred_check_branch
      %376 = sbr.rel (0) target = $region25
    $region24: #{tpu_custom_call.1} parent=1 // pred_region
      %s378 = ssub.s32 32, 32
      %379 = vsyncadd [#allocation4], %s378
      %s380 = sshll.u32 [#allocation7], 4
      %s381 = int_to_ptr.vmem [resolvable:$true] %s380
      %386 = dma.vmem_to_hbm [thread:$0]  %s381, 32, %s3, [#allocation4], 16, 16, 1
    $region25: #{tpu_custom_call.1} parent=1 // pred_fallthru
      _
    // Predicated region
    $region26: #{tpu_custom_call.1} parent=1 // pred_check
      _
    $region27: #{tpu_custom_call.1} parent=1 // pred_check_branch
      %388 = sbr.rel (0) target = $region29
    $region28: #{tpu_custom_call.1} parent=1 // pred_region
      %389 = dma.done [#allocation4], 32
    $region29: #{tpu_custom_call.1} parent=1 // pred_fallthru
      _
    %390 = vsyncpa [#allocation3], 1
    %391 = vsyncpa [#allocation6], 1
    %392 = vsyncpa [#allocation4], 1

</llo_original>
